<compile_context>
chip_gen: v5e
topology: v5e:2x2
jax: 0.10.0
libtpu: 0.0.40
codegen_flags: <defaults>
</compile_context>

<pallas_src>
import functools

import jax
import jax.numpy as jnp
from jax import lax
from jax.experimental import pallas as pl
from jax.experimental.pallas import tpu as pltpu

EPS = 1e-5


def _vmem_limit_bytes():
    """Scoped-VMEM limit: half of physical VMEM (=> 64 MiB on 128 MiB parts,
    32 MiB on v7x's 64 MiB parts).  Conservative fallback if the query fails."""
    try:
        phys = pltpu.get_tpu_info().vmem_capacity_bytes
    except Exception:
        phys = 64 * 1024 * 1024
    return max(16 * 1024 * 1024, phys // 2)


def _pick_hw_tile(hw, c, vmem_limit):
    """Lane-dense spatial tile.  Returns (thw, n_hw, needs_mask).

    The tile is sized so the per-grid-step footprint (x,y f32 double-buffered
    + bf16 conv-out + f32 feasc buffers, plus the (C,2C) weights) stays inside
    ~half of the scoped limit, which itself is half of physical VMEM — safe on
    v7x (64 MiB) as well as v5e/v6e (128 MiB), and large enough to stay in the
    >=512-lane-tile regime whenever the budget allows.
    """
    budget = vmem_limit // 2 - 8 * c * c          # leave room for the weights
    budget = max(budget, 2 * 1024 * 1024)
    cap = budget // (20 * c)                      # ~20 B per (channel, hw) element
    cap = max(128, cap - cap % 128)
    if hw <= cap:
        return hw, 1, False                       # single full block
    t = cap
    while t >= 128:                               # prefer an exact divisor (no tail)
        if hw % t == 0:
            return t, hw // t, False
        t -= 128
    t = cap                                       # cdiv grid + masked tail tile
    return t, -(-hw // t), True


# --------------------------------------------------------------------------
# Pass 1: fused 1x1 conv (two K=C matmuls) + per-(b, tile) channel sum /
# sum-sq partials (bias-shifted) for the training-mode BatchNorm2d.
# Grid = (B, n_hw); both axes "parallel" (no accumulator carry).
# --------------------------------------------------------------------------
def _make_conv_stats_kernel(hw_total, thw, needs_mask):
    def kernel(x_ref, y_ref, wx_ref, wy_ref, b_ref, conv_ref, sum_ref, sq_ref):
        # x_ref, y_ref: (1, C, thw)   wx/wy: (C, C)   b_ref: (C, 1)
        acc = jnp.dot(wx_ref[...], x_ref[0], preferred_element_type=jnp.float32)
        acc = acc + jnp.dot(wy_ref[...], y_ref[0], preferred_element_type=jnp.float32)
        conv_ref[0] = (acc + b_ref[...]).astype(conv_ref.dtype)

        # Statistics on the *pre-bias* value (bias-shifted sums avoid
        # E[x^2]-E[x]^2 cancellation when |bias| >> std).
        if needs_mask:
            valid = hw_total - pl.program_id(1) * thw
            lane = lax.broadcasted_iota(jnp.int32, acc.shape, 1)
            acc = jnp.where(lane < valid, acc, 0.0)
        sum_ref[...] = jnp.sum(acc, axis=1, keepdims=True)[None, None]
        sq_ref[...] = jnp.sum(acc * acc, axis=1, keepdims=True)[None, None]

    return kernel


# --------------------------------------------------------------------------
# Pass 2: apply the fused BatchNorm2d scale/shift (pure HBM streaming).
# --------------------------------------------------------------------------
def _bn_apply_kernel(conv_ref, scale_ref, shift_ref, feasc_ref):
    v = conv_ref[0].astype(jnp.float32) * scale_ref[...] + shift_ref[...]
    feasc_ref[0] = v.astype(feasc_ref.dtype)


# --------------------------------------------------------------------------
# Wrapper
# --------------------------------------------------------------------------
def ahbf_forward(params, x_nchw, y_nchw, logitx, logity, *, feasc_bf16=False):
    B, C, H, W = x_nchw.shape
    HW = H * W
    vmem_limit = _vmem_limit_bytes()
    thw, n_hw, needs_mask = _pick_hw_tile(HW, C, vmem_limit)

    # NCHW -> (B, C, HW): pure reshape, no HBM transpose.
    xf = x_nchw.reshape(B, C, HW)
    yf = y_nchw.reshape(B, C, HW)

    w = params["conv1_w"]                         # (C, 2C); cat([x, y]) order
    wx = w[:, :C]
    wy = w[:, C:]
    bias = params["conv1_b"].reshape(C, 1)

    cost1 = pl.CostEstimate(
        flops=2 * B * HW * (2 * C) * C,
        transcendentals=0,
        bytes_accessed=(2 * B * C * HW * 4        # x, y reads (f32)
                        + B * C * HW * 2          # conv intermediate write (bf16)
                        + 2 * C * C * 4 + C * 4   # weights + bias
                        + 2 * B * n_hw * C * 4),  # stat partials
    )

    conv_out, sum_part, sq_part = pl.pallas_call(
        _make_conv_stats_kernel(HW, thw, needs_mask),
        out_shape=(
            jax.ShapeDtypeStruct((B, C, HW), jnp.bfloat16),   # halves HBM round-trip
            jax.ShapeDtypeStruct((B, n_hw, C, 1), jnp.float32),
            jax.ShapeDtypeStruct((B, n_hw, C, 1), jnp.float32),
        ),
        grid_spec=pltpu.PrefetchScalarGridSpec(
            num_scalar_prefetch=0,
            grid=(B, n_hw),
            in_specs=[
                pl.BlockSpec((1, C, thw), lambda b, h: (b, 0, h)),
                pl.BlockSpec((1, C, thw), lambda b, h: (b, 0, h)),
                pl.BlockSpec((C, C), lambda b, h: (0, 0)),
                pl.BlockSpec((C, C), lambda b, h: (0, 0)),
                pl.BlockSpec((C, 1), lambda b, h: (0, 0)),
            ],
            out_specs=[
                pl.BlockSpec((1, C, thw), lambda b, h: (b, 0, h)),
                pl.BlockSpec((1, 1, C, 1), lambda b, h: (b, h, 0, 0)),
                pl.BlockSpec((1, 1, C, 1), lambda b, h: (b, h, 0, 0)),
            ],
        ),
        compiler_params=pltpu.CompilerParams(
            dimension_semantics=("parallel", "parallel"),
            vmem_limit_bytes=vmem_limit,
        ),
        cost_estimate=cost1,
    )(xf, yf, wx, wy, bias)

    # ---- BatchNorm2d (training mode) stats + pooled/logit head, from pass-1
    # f32 partials only (head overlaps with the pass-2 streaming kernel). ----
    n = B * HW
    sum_bc = jnp.sum(sum_part, axis=1)[..., 0]            # (B, C) pre-bias sums
    mean_shifted = jnp.sum(sum_bc, axis=0) / n            # (C,)  pre-bias mean
    var = jnp.maximum(
        jnp.sum(sq_part, axis=(0, 1))[..., 0] / n - mean_shifted * mean_shifted, 0.0)
    mean = mean_shifted + params["conv1_b"]
    scale = params["bn1_gamma"] * lax.rsqrt(var + EPS)
    shift = params["bn1_beta"] - mean * scale
    # Adaptive avg-pool directly from the f32 per-sample sums.
    pooled = (sum_bc / HW + params["conv1_b"]) * scale + shift      # (B, C)

    # control_v1 (Linear C->2) + BatchNorm1d(2, training) + ReLU + softmax.
    # (B, 2)-sized work: kept as plain-JAX glue (XLA fuses it for free).
    feas = pooled @ params["fc_w"].T + params["fc_b"]
    m1 = jnp.mean(feas, axis=0)
    v1 = jnp.maximum(jnp.mean((feas - m1) ** 2, axis=0), 0.0)
    feas = (feas - m1) * lax.rsqrt(v1 + EPS) * params["bnv1_gamma"] + params["bnv1_beta"]
    feas = jax.nn.relu(feas)
    feas = jax.nn.softmax(feas, axis=1)
    logit = feas[:, 0:1] * logitx + feas[:, 1:2] * logity

    # ---- Pass 2: apply fused scale/shift to produce feasc. ----
    feasc_dtype = jnp.bfloat16 if feasc_bf16 else jnp.float32
    out_bytes = 2 if feasc_bf16 else 4
    cost2 = pl.CostEstimate(
        flops=2 * B * C * HW,
        transcendentals=0,
        bytes_accessed=B * C * HW * (2 + out_bytes) + 2 * C * 4,
    )
    feasc_f = pl.pallas_call(
        _bn_apply_kernel,
        out_shape=jax.ShapeDtypeStruct((B, C, HW), feasc_dtype),
        grid_spec=pltpu.PrefetchScalarGridSpec(
            num_scalar_prefetch=0,
            grid=(B, n_hw),
            in_specs=[
                pl.BlockSpec((1, C, thw), lambda b, h: (b, 0, h)),
                pl.BlockSpec((C, 1), lambda b, h: (0, 0)),
                pl.BlockSpec((C, 1), lambda b, h: (0, 0)),
            ],
            out_specs=pl.BlockSpec((1, C, thw), lambda b, h: (b, 0, h)),
        ),
        compiler_params=pltpu.CompilerParams(
            dimension_semantics=("parallel", "parallel"),
            vmem_limit_bytes=vmem_limit,
        ),
        cost_estimate=cost2,
        # bf16 feasc reuses the bf16 conv-intermediate buffer in place.
        input_output_aliases=({0: 0} if feasc_bf16 else {}),
    )(conv_out, scale.reshape(C, 1), shift.reshape(C, 1))

    # (B, C, HW) -> NCHW is a free reshape.
    feasc = feasc_f.reshape(B, C, H, W)
    return feasc, logit


# --------------------------------------------------------------------------
# Pure-JAX reference (sanity check).
# --------------------------------------------------------------------------
def ahbf_reference(params, x, y, lx, ly):
    B, C, H, W = x.shape
    cat = jnp.concatenate([x, y], axis=1)
    w = params["conv1_w"].reshape(C, 2 * C, 1, 1)
    conv = jax.lax.conv_general_dilated(
        cat, w, (1, 1), "VALID",
        dimension_numbers=("NCHW", "OIHW", "NCHW")) + params["conv1_b"].reshape(1, C, 1, 1)
    mean = jnp.mean(conv, axis=(0, 2, 3), keepdims=True)
    var = jnp.mean((conv - mean) ** 2, axis=(0, 2, 3), keepdims=True)
    feasc = ((conv - mean) / jnp.sqrt(var + EPS)
             * params["bn1_gamma"].reshape(1, C, 1, 1)
             + params["bn1_beta"].reshape(1, C, 1, 1))
    pooled = jnp.mean(feasc, axis=(2, 3))
    feas = pooled @ params["fc_w"].T + params["fc_b"]
    m1 = jnp.mean(feas, axis=0)
    v1 = jnp.mean((feas - m1) ** 2, axis=0)
    feas = (feas - m1) / jnp.sqrt(v1 + EPS) * params["bnv1_gamma"] + params["bnv1_beta"]
    feas = jax.nn.relu(feas)
    feas = jax.nn.softmax(feas, axis=1)
    logit = feas[:, 0:1] * lx + feas[:, 1:2] * ly
    return feasc, logit


if __name__ == "__main__":
    B, C, H, W, NC = 2, 8, 8, 8, 16

    key = jax.random.PRNGKey(0)
    kx, ky, klx, kly, k1, k2, k3, k4 = jax.random.split(key, 8)

    params = {
        "conv1_w": jax.random.normal(k1, (C, 2 * C), jnp.float32) * 0.1,
        "conv1_b": jax.random.normal(k2, (C,), jnp.float32) * 0.1,
        "bn1_gamma": jnp.ones((C,), jnp.float32),
        "bn1_beta": jnp.zeros((C,), jnp.float32),
        "fc_w": jax.random.normal(k3, (2, C), jnp.float32) * 0.1,
        "fc_b": jax.random.normal(k4, (2,), jnp.float32) * 0.1,
        "bnv1_gamma": jnp.ones((2,), jnp.float32),
        "bnv1_beta": jnp.zeros((2,), jnp.float32),
    }

    x = jax.random.normal(kx, (B, C, H, W), jnp.float32)
    y = jax.random.normal(ky, (B, C, H, W), jnp.float32)
    logitx = jax.random.normal(klx, (B, NC), jnp.float32)
    logity = jax.random.normal(kly, (B, NC), jnp.float32)

    feasc_ref, logit_ref = ahbf_reference(params, x, y, logitx, logity)

    for use_bf16 in (False, True):   # f32 feasc (module-faithful) and bf16/aliased path
        fwd = jax.jit(functools.partial(ahbf_forward, feasc_bf16=use_bf16))
        feasc, logit = fwd(params, x, y, logitx, logity)
        jax.block_until_ready((feasc, logit))
        assert jnp.allclose(feasc.astype(jnp.float32), feasc_ref,
                            rtol=2e-2, atol=2e-2), f"feasc mismatch (bf16={use_bf16})"
        assert jnp.allclose(logit, logit_ref,
                            rtol=2e-2, atol=2e-2), f"logit mismatch (bf16={use_bf16})"

    print("KERNEL_OK")
</pallas_src>

<mosaic_0001>
module attributes {stable_mosaic.version = 11 : i64} {
  func.func @kernel(%arg0: i32, %arg1: i32, %arg2: memref<1x8x64xf32, #tpu.memory_space<vmem>>, %arg3: memref<1x8x64xf32, #tpu.memory_space<vmem>>, %arg4: memref<8x8xf32, #tpu.memory_space<vmem>>, %arg5: memref<8x8xf32, #tpu.memory_space<vmem>>, %arg6: memref<8x1xf32, #tpu.memory_space<vmem>>, %arg7: memref<1x8x64xbf16, #tpu.memory_space<vmem>>, %arg8: memref<1x1x8x1xf32, #tpu.memory_space<vmem>>, %arg9: memref<1x1x8x1xf32, #tpu.memory_space<vmem>>) attributes {dimension_semantics = [#tpu.dimension_semantics<parallel>, #tpu.dimension_semantics<parallel>], iteration_bounds = array<i64: 2, 1>, scalar_prefetch = 0 : i64, scratch_operands = 0 : i64, tpu.core_type = #tpu.core_type<tc>, window_params = [{transform_indices = @transform_0, window_bounds = array<i64: 1, 8, 64>}, {transform_indices = @transform_1, window_bounds = array<i64: 1, 8, 64>}, {pipeline_mode = #tpu.pipeline_mode<synchronous>, transform_indices = @transform_2, window_bounds = array<i64: 8, 8>}, {pipeline_mode = #tpu.pipeline_mode<synchronous>, transform_indices = @transform_3, window_bounds = array<i64: 8, 8>}, {pipeline_mode = #tpu.pipeline_mode<synchronous>, transform_indices = @transform_4, window_bounds = array<i64: 8, 1>}, {transform_indices = @transform_5, window_bounds = array<i64: 1, 8, 64>}, {transform_indices = @transform_6, window_bounds = array<i64: 1, 1, 8, 1>}, {transform_indices = @transform_7, window_bounds = array<i64: 1, 1, 8, 1>}]} {
    %c0 = arith.constant 0 : index
    %c0_0 = arith.constant 0 : index
    %0 = vector.load %arg4[%c0, %c0_0] : memref<8x8xf32, #tpu.memory_space<vmem>>, vector<8x8xf32>
    %c0_1 = arith.constant 0 : index
    %c0_2 = arith.constant 0 : index
    %c0_3 = arith.constant 0 : index
    %1 = vector.load %arg2[%c0_1, %c0_2, %c0_3] : memref<1x8x64xf32, #tpu.memory_space<vmem>>, vector<1x8x64xf32>
    %2 = vector.shape_cast %1 : vector<1x8x64xf32> to vector<8x64xf32>
    %cst = arith.constant dense<0.000000e+00> : vector<8x64xf32>
    %3 = tpu.matmul %0, %2, %cst {dimension_numbers = #tpu.dot_dimension_numbers<[1], [0], [0], [1], [0, 0, 1, 1], [], []>} : vector<8x8xf32>, vector<8x64xf32>, vector<8x64xf32> -> vector<8x64xf32>
    %c0_4 = arith.constant 0 : index
    %c0_5 = arith.constant 0 : index
    %4 = vector.load %arg5[%c0_4, %c0_5] : memref<8x8xf32, #tpu.memory_space<vmem>>, vector<8x8xf32>
    %c0_6 = arith.constant 0 : index
    %c0_7 = arith.constant 0 : index
    %c0_8 = arith.constant 0 : index
    %5 = vector.load %arg3[%c0_6, %c0_7, %c0_8] : memref<1x8x64xf32, #tpu.memory_space<vmem>>, vector<1x8x64xf32>
    %6 = vector.shape_cast %5 : vector<1x8x64xf32> to vector<8x64xf32>
    %cst_9 = arith.constant dense<0.000000e+00> : vector<8x64xf32>
    %7 = tpu.matmul %4, %6, %cst_9 {dimension_numbers = #tpu.dot_dimension_numbers<[1], [0], [0], [1], [0, 0, 1, 1], [], []>} : vector<8x8xf32>, vector<8x64xf32>, vector<8x64xf32> -> vector<8x64xf32>
    %8 = arith.addf %3, %7 : vector<8x64xf32>
    %c0_10 = arith.constant 0 : index
    %c0_11 = arith.constant 0 : index
    %9 = vector.load %arg6[%c0_10, %c0_11] : memref<8x1xf32, #tpu.memory_space<vmem>>, vector<8x1xf32>
    %10 = vector.broadcast %9 : vector<8x1xf32> to vector<8x64xf32>
    %11 = arith.addf %8, %10 : vector<8x64xf32>
    %12 = arith.truncf %11 : vector<8x64xf32> to vector<8x64xbf16>
    %c0_12 = arith.constant 0 : index
    %c0_13 = arith.constant 0 : index
    %c0_14 = arith.constant 0 : index
    %13 = vector.load %arg7[%c0_12, %c0_13, %c0_14] : memref<1x8x64xbf16, #tpu.memory_space<vmem>>, vector<1x8x64xbf16>
    %14 = vector.shape_cast %13 : vector<1x8x64xbf16> to vector<8x64xbf16>
    %15 = vector.shape_cast %12 : vector<8x64xbf16> to vector<1x8x64xbf16>
    tpu.vector_store %arg7[%c0_12, %c0_13, %c0_14], %15 {strides = array<i32>} : memref<1x8x64xbf16, #tpu.memory_space<vmem>>, vector<1x8x64xbf16>,
    %cst_15 = arith.constant dense<0.000000e+00> : vector<8xf32>
    %16 = vector.multi_reduction <add>, %8, %cst_15 [1] : vector<8x64xf32> to vector<8xf32>
    %17 = vector.shape_cast %16 : vector<8xf32> to vector<8x1xf32>
    %18 = vector.shape_cast %17 : vector<8x1xf32> to vector<1x1x8x1xf32>
    %c0_16 = arith.constant 0 : index
    %c0_17 = arith.constant 0 : index
    %c0_18 = arith.constant 0 : index
    %c0_19 = arith.constant 0 : index
    %19 = vector.load %arg8[%c0_16, %c0_17, %c0_18, %c0_19] : memref<1x1x8x1xf32, #tpu.memory_space<vmem>>, vector<1x1x8x1xf32>
    tpu.vector_store %arg8[%c0_16, %c0_17, %c0_18, %c0_19], %18 {strides = array<i32>} : memref<1x1x8x1xf32, #tpu.memory_space<vmem>>, vector<1x1x8x1xf32>,
    %20 = arith.mulf %8, %8 : vector<8x64xf32>
    %cst_20 = arith.constant dense<0.000000e+00> : vector<8xf32>
    %21 = vector.multi_reduction <add>, %20, %cst_20 [1] : vector<8x64xf32> to vector<8xf32>
    %22 = vector.shape_cast %21 : vector<8xf32> to vector<8x1xf32>
    %23 = vector.shape_cast %22 : vector<8x1xf32> to vector<1x1x8x1xf32>
    %c0_21 = arith.constant 0 : index
    %c0_22 = arith.constant 0 : index
    %c0_23 = arith.constant 0 : index
    %c0_24 = arith.constant 0 : index
    %24 = vector.load %arg9[%c0_21, %c0_22, %c0_23, %c0_24] : memref<1x1x8x1xf32, #tpu.memory_space<vmem>>, vector<1x1x8x1xf32>
    tpu.vector_store %arg9[%c0_21, %c0_22, %c0_23, %c0_24], %23 {strides = array<i32>} : memref<1x1x8x1xf32, #tpu.memory_space<vmem>>, vector<1x1x8x1xf32>,
    return
  }
  func.func @transform_0(%arg0: i32, %arg1: i32) -> (i32, i32, i32) {
    %c0_i32 = arith.constant 0 : i32
    %c0_i32_0 = arith.constant 0 : i32
    return %arg0, %c0_i32, %arg1 : i32, i32, i32
  }
  func.func @transform_1(%arg0: i32, %arg1: i32) -> (i32, i32, i32) {
    %c0_i32 = arith.constant 0 : i32
    %c0_i32_0 = arith.constant 0 : i32
    return %arg0, %c0_i32, %arg1 : i32, i32, i32
  }
  func.func @transform_2(%arg0: i32, %arg1: i32) -> (i32, i32) {
    %c0_i32 = arith.constant 0 : i32
    %c0_i32_0 = arith.constant 0 : i32
    %c0_i32_1 = arith.constant 0 : i32
    return %c0_i32, %c0_i32_0 : i32, i32
  }
  func.func @transform_3(%arg0: i32, %arg1: i32) -> (i32, i32) {
    %c0_i32 = arith.constant 0 : i32
    %c0_i32_0 = arith.constant 0 : i32
    %c0_i32_1 = arith.constant 0 : i32
    return %c0_i32, %c0_i32_0 : i32, i32
  }
  func.func @transform_4(%arg0: i32, %arg1: i32) -> (i32, i32) {
    %c0_i32 = arith.constant 0 : i32
    %c0_i32_0 = arith.constant 0 : i32
    %c0_i32_1 = arith.constant 0 : i32
    return %c0_i32, %c0_i32_0 : i32, i32
  }
  func.func @transform_5(%arg0: i32, %arg1: i32) -> (i32, i32, i32) {
    %c0_i32 = arith.constant 0 : i32
    %c0_i32_0 = arith.constant 0 : i32
    return %arg0, %c0_i32, %arg1 : i32, i32, i32
  }
  func.func @transform_6(%arg0: i32, %arg1: i32) -> (i32, i32, i32, i32) {
    %c0_i32 = arith.constant 0 : i32
    %c0_i32_0 = arith.constant 0 : i32
    %c0_i32_1 = arith.constant 0 : i32
    return %arg0, %arg1, %c0_i32, %c0_i32_0 : i32, i32, i32, i32
  }
  func.func @transform_7(%arg0: i32, %arg1: i32) -> (i32, i32, i32, i32) {
    %c0_i32 = arith.constant 0 : i32
    %c0_i32_0 = arith.constant 0 : i32
    %c0_i32_1 = arith.constant 0 : i32
    return %arg0, %arg1, %c0_i32, %c0_i32_0 : i32, i32, i32, i32
  }
}

module attributes {stable_mosaic.version = 11 : i64} {
  func.func @_bn_apply_kernel(%arg0: i32, %arg1: i32, %arg2: memref<1x8x64xbf16, #tpu.memory_space<vmem>>, %arg3: memref<8x1xf32, #tpu.memory_space<vmem>>, %arg4: memref<8x1xf32, #tpu.memory_space<vmem>>, %arg5: memref<1x8x64xf32, #tpu.memory_space<vmem>>) attributes {dimension_semantics = [#tpu.dimension_semantics<parallel>, #tpu.dimension_semantics<parallel>], iteration_bounds = array<i64: 2, 1>, scalar_prefetch = 0 : i64, scratch_operands = 0 : i64, tpu.core_type = #tpu.core_type<tc>, window_params = [{transform_indices = @transform_0, window_bounds = array<i64: 1, 8, 64>}, {pipeline_mode = #tpu.pipeline_mode<synchronous>, transform_indices = @transform_1, window_bounds = array<i64: 8, 1>}, {pipeline_mode = #tpu.pipeline_mode<synchronous>, transform_indices = @transform_2, window_bounds = array<i64: 8, 1>}, {transform_indices = @transform_3, window_bounds = array<i64: 1, 8, 64>}]} {
    %c0 = arith.constant 0 : index
    %c0_0 = arith.constant 0 : index
    %c0_1 = arith.constant 0 : index
    %0 = vector.load %arg2[%c0, %c0_0, %c0_1] : memref<1x8x64xbf16, #tpu.memory_space<vmem>>, vector<1x8x64xbf16>
    %1 = vector.shape_cast %0 : vector<1x8x64xbf16> to vector<8x64xbf16>
    %2 = arith.extf %1 : vector<8x64xbf16> to vector<8x64xf32>
    %c0_2 = arith.constant 0 : index
    %c0_3 = arith.constant 0 : index
    %3 = vector.load %arg3[%c0_2, %c0_3] : memref<8x1xf32, #tpu.memory_space<vmem>>, vector<8x1xf32>
    %4 = vector.broadcast %3 : vector<8x1xf32> to vector<8x64xf32>
    %5 = arith.mulf %2, %4 : vector<8x64xf32>
    %c0_4 = arith.constant 0 : index
    %c0_5 = arith.constant 0 : index
    %6 = vector.load %arg4[%c0_4, %c0_5] : memref<8x1xf32, #tpu.memory_space<vmem>>, vector<8x1xf32>
    %7 = vector.broadcast %6 : vector<8x1xf32> to vector<8x64xf32>
    %8 = arith.addf %5, %7 : vector<8x64xf32>
    %c0_6 = arith.constant 0 : index
    %c0_7 = arith.constant 0 : index
    %c0_8 = arith.constant 0 : index
    %9 = vector.load %arg5[%c0_6, %c0_7, %c0_8] : memref<1x8x64xf32, #tpu.memory_space<vmem>>, vector<1x8x64xf32>
    %10 = vector.shape_cast %9 : vector<1x8x64xf32> to vector<8x64xf32>
    %11 = vector.shape_cast %8 : vector<8x64xf32> to vector<1x8x64xf32>
    tpu.vector_store %arg5[%c0_6, %c0_7, %c0_8], %11 {strides = array<i32>} : memref<1x8x64xf32, #tpu.memory_space<vmem>>, vector<1x8x64xf32>,
    return
  }
  func.func @transform_0(%arg0: i32, %arg1: i32) -> (i32, i32, i32) {
    %c0_i32 = arith.constant 0 : i32
    %c0_i32_0 = arith.constant 0 : i32
    return %arg0, %c0_i32, %arg1 : i32, i32, i32
  }
  func.func @transform_1(%arg0: i32, %arg1: i32) -> (i32, i32) {
    %c0_i32 = arith.constant 0 : i32
    %c0_i32_0 = arith.constant 0 : i32
    %c0_i32_1 = arith.constant 0 : i32
    return %c0_i32, %c0_i32_0 : i32, i32
  }
  func.func @transform_2(%arg0: i32, %arg1: i32) -> (i32, i32) {
    %c0_i32 = arith.constant 0 : i32
    %c0_i32_0 = arith.constant 0 : i32
    %c0_i32_1 = arith.constant 0 : i32
    return %c0_i32, %c0_i32_0 : i32, i32
  }
  func.func @transform_3(%arg0: i32, %arg1: i32) -> (i32, i32, i32) {
    %c0_i32 = arith.constant 0 : i32
    %c0_i32_0 = arith.constant 0 : i32
    return %arg0, %c0_i32, %arg1 : i32, i32, i32
  }
}

</mosaic_0001>

<llo_original>
// kernel: ahbf_forward.3
$region0: #{ahbf_forward.3}
  #allocation0 [shape = 'u32[]', space=smem, size = 0x4, offset = 0x4, fixed_abs, tag = 'smem constant byte address 0x4 - core index']
  #allocation1 [shape = 'u32[72,128]{1,0:T(1,128)}', space=vmem, size = 0x9000, scoped, tag = 'internal scratch']
  %s0 = inlined_call_operand.vmem [shape: bf16[2,8,64], index: 0, kind: input, shape index: {}]
  %s1 = inlined_call_operand.vmem [shape: f32[8,1], index: 1, kind: input, shape index: {}]
  %s2 = inlined_call_operand.vmem [shape: f32[8,1], index: 2, kind: input, shape index: {}]
  %s3 = inlined_call_operand.vmem [shape: f32[2,8,64], index: 3, kind: output, shape index: {}]
  %s4 = sld [smem:[#allocation0]]
  $region45: #{ahbf_forward.3} parent=0
    _
  %s6 = ssub.s32 1, %s4
  %s7 = scalar_select 0, %s6, %s4
  loop: start=0, step=1, limit=4
  $region2: #{ahbf_forward.3} parent=0 // loop_pre_header
    _
  $region3: #{ahbf_forward.3} parent=0 // loop_header
    %s9 = sphi 0, %s13
    %p10 = scmp.ge.s32.totalorder %s9, 4
    %s16 = sphi 0, %s28
    %s17 = sphi 0, %s24
    %s18 = sphi 0, %s16
    %s19 = sphi 0, %s17
    %s20 = sphi 0, %s18
    %s21 = sphi 0, %s19
    %s33 = sphi 0, %s35
    %s36 = sphi 0, %s33
    %s37 = sphi 0, %s36
    %s53 = sphi 0, %s37
    %s57 = sphi 0, %s57
    %s59 = sphi 0, %s57
    %s60 = sphi 0, %s59
    %s74 = sphi 0, %s60
    %s78 = sphi 0, %s78
    %s80 = sphi 0, %s78
    %s81 = sphi 0, %s80
    %s95 = sphi 0, %s81
    %s103 = sphi 0, %s105
    %s106 = sphi 0, %s103
    %s107 = sphi 0, %s106
    %s123 = sphi 0, %s107
  $region4: #{ahbf_forward.3} parent=0 // loop_header_branch
    %12 = sbr.rel (%p10) target = $region8
  $region5: #{ahbf_forward.3} parent=0 // loop_body
    %s14 = ssub.s32 %s9, 1
    %s15 = ssub.s32 %s9, 2
    %s22 = sadd.s32 1, %s17
    %p23 = scmp.ge.s32.totalorder %s22, 1
    %s24 = scalar_select %p23, 0, %s22
    %s25 = sadd.s32 1, %s16
    %s26 = scalar_select %p23, %s25, %s16
    %p27 = scmp.ge.s32.totalorder %s26, 2
    %s28 = scalar_select %p27, 0, %s26
    %s29 = ssub.s32 %s16, %s28
    %s30 = ssub.s32 %s17, %s24
    %s31 = sor.u32 %s29, %s30
    %p32 = scmp.eq.s32.totalorder %s31, 0
    %s34 = sadd.s32 %s33, 1
    %s35 = scalar_select %p32, %s33, %s34
    %p38 = pneg %p32
    %p39 = scmp.eq.s32.totalorder %s9, 1
    %p40 = por %p38, %p39
    %p41 = scmp.ne.s32.totalorder %s33, %s36
    %p42 = scmp.eq.s32.totalorder %s9, 0
    %p43 = por %p41, %p42
    %p44 = scmp.ne.s32.totalorder %s33, %s36
    %p45 = scmp.eq.s32.totalorder %s14, 1
    %p46 = por %p44, %p45
    %p47 = scmp.ne.s32.totalorder %s36, %s37
    %p48 = scmp.eq.s32.totalorder %s14, 0
    %p49 = por %p47, %p48
    %p50 = scmp.ne.s32.totalorder %s36, %s37
    %p51 = scmp.eq.s32.totalorder %s15, 1
    %p52 = por %p50, %p51
    %p54 = scmp.ne.s32.totalorder %s37, %s53
    %p55 = scmp.eq.s32.totalorder %s15, 0
    %p56 = por %p54, %p55
    %s58 = sadd.s32 %s57, 1
    %p61 = scmp.eq.s32.totalorder %s9, 1
    %p62 = scmp.ne.s32.totalorder %s57, %s59
    %p63 = scmp.eq.s32.totalorder %s9, 0
    %p64 = por %p62, %p63
    %p65 = scmp.ne.s32.totalorder %s57, %s59
    %p66 = scmp.eq.s32.totalorder %s14, 1
    %p67 = por %p65, %p66
    %p68 = scmp.ne.s32.totalorder %s59, %s60
    %p69 = scmp.eq.s32.totalorder %s14, 0
    %p70 = por %p68, %p69
    %p71 = scmp.ne.s32.totalorder %s59, %s60
    %p72 = scmp.eq.s32.totalorder %s15, 1
    %p73 = por %p71, %p72
    %p75 = scmp.ne.s32.totalorder %s60, %s74
    %p76 = scmp.eq.s32.totalorder %s15, 0
    %p77 = por %p75, %p76
    %s79 = sadd.s32 %s78, 1
    %p82 = scmp.eq.s32.totalorder %s9, 1
    %p83 = scmp.ne.s32.totalorder %s78, %s80
    %p84 = scmp.eq.s32.totalorder %s9, 0
    %p85 = por %p83, %p84
    %p86 = scmp.ne.s32.totalorder %s78, %s80
    %p87 = scmp.eq.s32.totalorder %s14, 1
    %p88 = por %p86, %p87
    %p89 = scmp.ne.s32.totalorder %s80, %s81
    %p90 = scmp.eq.s32.totalorder %s14, 0
    %p91 = por %p89, %p90
    %p92 = scmp.ne.s32.totalorder %s80, %s81
    %p93 = scmp.eq.s32.totalorder %s15, 1
    %p94 = por %p92, %p93
    %p96 = scmp.ne.s32.totalorder %s81, %s95
    %p97 = scmp.eq.s32.totalorder %s15, 0
    %p98 = por %p96, %p97
    %s99 = ssub.s32 %s16, %s28
    %s100 = ssub.s32 %s17, %s24
    %s101 = sor.u32 %s99, %s100
    %p102 = scmp.eq.s32.totalorder %s101, 0
    %s104 = sadd.s32 %s103, 1
    %s105 = scalar_select %p102, %s103, %s104
    %p108 = pneg %p102
    %p109 = scmp.eq.s32.totalorder %s9, 1
    %p110 = por %p108, %p109
    %p111 = scmp.ne.s32.totalorder %s103, %s106
    %p112 = scmp.eq.s32.totalorder %s9, 0
    %p113 = por %p111, %p112
    %p114 = scmp.ne.s32.totalorder %s103, %s106
    %p115 = scmp.eq.s32.totalorder %s14, 1
    %p116 = por %p114, %p115
    %p117 = scmp.ne.s32.totalorder %s106, %s107
    %p118 = scmp.eq.s32.totalorder %s14, 0
    %p119 = por %p117, %p118
    %p120 = scmp.ne.s32.totalorder %s106, %s107
    %p121 = scmp.eq.s32.totalorder %s15, 1
    %p122 = por %p120, %p121
    %p124 = scmp.ne.s32.totalorder %s107, %s123
    %p125 = scmp.eq.s32.totalorder %s15, 0
    %p126 = por %p124, %p125
    %p127 = scmp.le.s32.totalorder 1, %s9
    %p128 = scmp.lt.s32.totalorder %s9, 3
    %p129 = pnand %p127, %p128
    %p130 = pneg %p129
    // Predicated region
    $region9: #{ahbf_forward.3} parent=5 // pred_check
      _
    $region10: #{ahbf_forward.3} parent=5 // pred_check_branch
      %132 = sbr.rel (%p129) target = $region12
    $region11: #{ahbf_forward.3} parent=5 // pred_region
      %s133 = ssub.s32 %s9, 1
      // Predicated region
      $region13: #{ahbf_forward.3} parent=11 // pred_check
        %p134 = pneg %p70
      $region14: #{ahbf_forward.3} parent=11 // pred_check_branch
        %136 = sbr.rel (%p134) target = $region16
      $region15: #{ahbf_forward.3} parent=11 // pred_region
        _
      $region16: #{ahbf_forward.3} parent=11 // pred_fallthru
        _
      // Predicated region
      $region17: #{ahbf_forward.3} parent=11 // pred_check
        %p137 = pneg %p91
      $region18: #{ahbf_forward.3} parent=11 // pred_check_branch
        %139 = sbr.rel (%p137) target = $region20
      $region19: #{ahbf_forward.3} parent=11 // pred_region
        _
      $region20: #{ahbf_forward.3} parent=11 // pred_fallthru
        _
    $region12: #{ahbf_forward.3} parent=5 // pred_fallthru
      _
    %p140 = scmp.lt.s32.totalorder %s9, 2
    // Predicated region
    $region21: #{ahbf_forward.3} parent=5 // pred_check
      %p141 = pneg %p140
    $region22: #{ahbf_forward.3} parent=5 // pred_check_branch
      %143 = sbr.rel (%p141) target = $region24
    $region23: #{ahbf_forward.3} parent=5 // pred_region
      // Predicated region
      $region25: #{ahbf_forward.3} parent=23 // pred_check
        %p144 = pneg %p43
      $region26: #{ahbf_forward.3} parent=23 // pred_check_branch
        %146 = sbr.rel (%p144) target = $region28
      $region27: #{ahbf_forward.3} parent=23 // pred_region
        %p147 = scmp.lt.s32.totalorder %s16, 1
        %s148 = scalar_select %p147, %s16, 1
        %p149 = scmp.lt.s32.totalorder %s17, 0
        %s150 = scalar_select %p149, %s17, 0
        %s151 = sadd.s32 %s150, %s148
        %s152 = smul.addr %s151, 4
        %s153 = scalar_lea.vmem %s0, %s152
      $region28: #{ahbf_forward.3} parent=23 // pred_fallthru
        _
    $region24: #{ahbf_forward.3} parent=5 // pred_fallthru
      _
    %p154 = scmp.le.s32.totalorder 1, %s9
    %p155 = scmp.lt.s32.totalorder %s9, 3
    %p156 = pnand %p154, %p155
    %p157 = pneg %p156
    // Predicated region
    $region29: #{ahbf_forward.3} parent=5 // pred_check
      _
    $region30: #{ahbf_forward.3} parent=5 // pred_check_branch
      %159 = sbr.rel (%p156) target = $region32
    $region31: #{ahbf_forward.3} parent=5 // pred_region
      %s160 = ssub.s32 %s9, 1
      %p161 = scmp.lt.s32.totalorder %s18, 1
      %s162 = scalar_select %p161, %s18, 1
      %p163 = scmp.lt.s32.totalorder %s19, 0
      %s164 = scalar_select %p163, %s19, 0
      %s165 = sadd.s32 %s164, %s162
      %s166 = smul.addr %s165, 4
      %s167 = scalar_lea.vmem %s0, %s166
      %p168 = pneg %p49
      %p169 = pneg %p46
      %p170 = pneg %p70
      %p171 = pneg %p67
      %p172 = pneg %p91
      %p173 = pneg %p88
      %p174 = pneg %p119
      %p175 = pneg %p116
      %p176 = scmp.lt.s32.totalorder %s18, 1
      %s177 = scalar_select %p176, %s18, 1
      %p178 = scmp.lt.s32.totalorder %s19, 0
      %s179 = scalar_select %p178, %s19, 0
      %s180 = sadd.s32 %s179, %s177
      %s181 = smul.addr %s180, 8
      %s182 = scalar_lea.vmem %s3, %s181
      %p183 = scmp.lt.s32.totalorder %s18, 1
      %s184 = scalar_select %p183, %s18, 1
      %p185 = scmp.lt.s32.totalorder %s19, 0
      %s186 = scalar_select %p185, %s19, 0
      %s187 = sadd.s32 %s186, %s184
      %s188 = smul.addr %s187, 4
      %s189 = scalar_lea.vmem %s0, %s188
      %p190 = scmp.lt.s32.totalorder %s18, 1
      %s191 = scalar_select %p190, %s18, 1
      %p192 = scmp.lt.s32.totalorder %s19, 0
      %s193 = scalar_select %p192, %s19, 0
      %s194 = sadd.s32 %s193, %s191
      %s195 = smul.addr %s194, 8
      %s196 = scalar_lea.vmem %s3, %s195
      %v197 = vld [vmem:[%s189] sm:$0xf]
      %v198 = vunpack.c.l.bf16 %v197
      %v199 = vld [vmem:[%s1] sm:$0xff]
      %201 = vset.pattern.permute.xlu0 0
      %202 = vperm.xlu0 %201, %v199
      %v203 = vpop.permute.xlu0 %202
      %v205 = vmul.f32 %v198, %v203
      %v206 = vld [vmem:[%s2] sm:$0xff]
      %208 = vset.pattern.permute.xlu0 0
      %209 = vperm.xlu0 %208, %v206
      %v210 = vpop.permute.xlu0 %209
      %v212 = vadd.f32 %v205, %v210
      %vm213 = vcmask 523264
      %214 = vst.msk [vmem:[%s196] sm:$0xff] %vm213, %v212
      %p215 = scmp.lt.s32.totalorder %s18, 1
      %s216 = scalar_select %p215, %s18, 1
      %p217 = scmp.lt.s32.totalorder %s19, 0
      %s218 = scalar_select %p217, %s19, 0
      %s219 = sadd.s32 %s218, %s216
      %s220 = smul.addr %s219, 8
      %s221 = scalar_lea.vmem %s3, %s220
      // Predicated region
      $region33: #{ahbf_forward.3} parent=31 // pred_check
        %p222 = pneg %p116
      $region34: #{ahbf_forward.3} parent=31 // pred_check_branch
        %224 = sbr.rel (%p222) target = $region36
      $region35: #{ahbf_forward.3} parent=31 // pred_region
        _
      $region36: #{ahbf_forward.3} parent=31 // pred_fallthru
        _
    $region32: #{ahbf_forward.3} parent=5 // pred_fallthru
      _
    %p225 = scmp.le.s32.totalorder 2, %s9
    // Predicated region
    $region37: #{ahbf_forward.3} parent=5 // pred_check
      %p226 = pneg %p225
    $region38: #{ahbf_forward.3} parent=5 // pred_check_branch
      %228 = sbr.rel (%p226) target = $region40
    $region39: #{ahbf_forward.3} parent=5 // pred_region
      %s229 = ssub.s32 %s9, 2
      // Predicated region
      $region41: #{ahbf_forward.3} parent=39 // pred_check
        %p230 = pneg %p122
      $region42: #{ahbf_forward.3} parent=39 // pred_check_branch
        %232 = sbr.rel (%p230) target = $region44
      $region43: #{ahbf_forward.3} parent=39 // pred_region
        %p233 = scmp.lt.s32.totalorder %s20, 1
        %s234 = scalar_select %p233, %s20, 1
        %p235 = scmp.lt.s32.totalorder %s21, 0
        %s236 = scalar_select %p235, %s21, 0
        %s237 = sadd.s32 %s236, %s234
        %s238 = smul.addr %s237, 8
        %s239 = scalar_lea.vmem %s3, %s238
      $region44: #{ahbf_forward.3} parent=39 // pred_fallthru
        _
    $region40: #{ahbf_forward.3} parent=5 // pred_fallthru
      _
  $region6: #{ahbf_forward.3} parent=0 // loop_footer
    %s13 = sadd.s32 1, %s9
  $region7: #{ahbf_forward.3} parent=0 // loop_footer_branch
    %8 = sbr.rel target = $region3
  $region8: #{ahbf_forward.3} parent=0 // loop_exit
    _

// kernel: ahbf_forward.2
$region0: #{ahbf_forward.2}
  #allocation0 [shape = 'u32[]', space=smem, size = 0x4, offset = 0x4, fixed_abs, tag = 'smem constant byte address 0x4 - core index']
  #allocation1 [shape = 'u32[72,128]{1,0:T(1,128)}', space=vmem, size = 0x9000, scoped, tag = 'internal scratch']
  %s0 = inlined_call_operand.vmem [shape: f32[2,8,64], index: 0, kind: input, shape index: {}]
  %s1 = inlined_call_operand.vmem [shape: f32[2,8,64], index: 1, kind: input, shape index: {}]
  %s2 = inlined_call_operand.vmem [shape: f32[8,8], index: 2, kind: input, shape index: {}]
  %s3 = inlined_call_operand.vmem [shape: f32[8,8], index: 3, kind: input, shape index: {}]
  %s4 = inlined_call_operand.vmem [shape: f32[8,1], index: 4, kind: input, shape index: {}]
  %s5 = inlined_call_operand.vmem [shape: bf16[2,8,64], index: 5, kind: output, shape index: {0}]
  %s6 = inlined_call_operand.vmem [shape: f32[2,1,8,1], index: 6, kind: output, shape index: {1}]
  %s7 = inlined_call_operand.vmem [shape: f32[2,1,8,1], index: 7, kind: output, shape index: {2}]
  %8 = xla_tuple %s5, %s6, %s7
  %s9 = sld [smem:[#allocation0]]
  $region69: #{ahbf_forward.2} parent=0
    _
  %s11 = ssub.s32 1, %s9
  %s12 = scalar_select 0, %s11, %s9
  loop: start=0, step=1, limit=4
  $region2: #{ahbf_forward.2} parent=0 // loop_pre_header
    _
  $region3: #{ahbf_forward.2} parent=0 // loop_header
    %s14 = sphi 0, %s18
    %p15 = scmp.ge.s32.totalorder %s14, 4
    %s21 = sphi 0, %s33
    %s22 = sphi 0, %s29
    %s23 = sphi 0, %s21
    %s24 = sphi 0, %s22
    %s25 = sphi 0, %s23
    %s26 = sphi 0, %s24
    %s38 = sphi 0, %s40
    %s41 = sphi 0, %s38
    %s42 = sphi 0, %s41
    %s58 = sphi 0, %s42
    %s66 = sphi 0, %s68
    %s69 = sphi 0, %s66
    %s70 = sphi 0, %s69
    %s86 = sphi 0, %s70
    %s90 = sphi 0, %s90
    %s92 = sphi 0, %s90
    %s93 = sphi 0, %s92
    %s107 = sphi 0, %s93
    %s111 = sphi 0, %s111
    %s113 = sphi 0, %s111
    %s114 = sphi 0, %s113
    %s128 = sphi 0, %s114
    %s132 = sphi 0, %s132
    %s134 = sphi 0, %s132
    %s135 = sphi 0, %s134
    %s149 = sphi 0, %s135
    %s157 = sphi 0, %s159
    %s160 = sphi 0, %s157
    %s161 = sphi 0, %s160
    %s177 = sphi 0, %s161
    %s185 = sphi 0, %s187
    %s188 = sphi 0, %s185
    %s189 = sphi 0, %s188
    %s205 = sphi 0, %s189
    %s213 = sphi 0, %s215
    %s216 = sphi 0, %s213
    %s217 = sphi 0, %s216
    %s233 = sphi 0, %s217
  $region4: #{ahbf_forward.2} parent=0 // loop_header_branch
    %17 = sbr.rel (%p15) target = $region8
  $region5: #{ahbf_forward.2} parent=0 // loop_body
    %s19 = ssub.s32 %s14, 1
    %s20 = ssub.s32 %s14, 2
    %s27 = sadd.s32 1, %s22
    %p28 = scmp.ge.s32.totalorder %s27, 1
    %s29 = scalar_select %p28, 0, %s27
    %s30 = sadd.s32 1, %s21
    %s31 = scalar_select %p28, %s30, %s21
    %p32 = scmp.ge.s32.totalorder %s31, 2
    %s33 = scalar_select %p32, 0, %s31
    %s34 = ssub.s32 %s21, %s33
    %s35 = ssub.s32 %s22, %s29
    %s36 = sor.u32 %s34, %s35
    %p37 = scmp.eq.s32.totalorder %s36, 0
    %s39 = sadd.s32 %s38, 1
    %s40 = scalar_select %p37, %s38, %s39
    %p43 = pneg %p37
    %p44 = scmp.eq.s32.totalorder %s14, 1
    %p45 = por %p43, %p44
    %p46 = scmp.ne.s32.totalorder %s38, %s41
    %p47 = scmp.eq.s32.totalorder %s14, 0
    %p48 = por %p46, %p47
    %p49 = scmp.ne.s32.totalorder %s38, %s41
    %p50 = scmp.eq.s32.totalorder %s19, 1
    %p51 = por %p49, %p50
    %p52 = scmp.ne.s32.totalorder %s41, %s42
    %p53 = scmp.eq.s32.totalorder %s19, 0
    %p54 = por %p52, %p53
    %p55 = scmp.ne.s32.totalorder %s41, %s42
    %p56 = scmp.eq.s32.totalorder %s20, 1
    %p57 = por %p55, %p56
    %p59 = scmp.ne.s32.totalorder %s42, %s58
    %p60 = scmp.eq.s32.totalorder %s20, 0
    %p61 = por %p59, %p60
    %s62 = ssub.s32 %s21, %s33
    %s63 = ssub.s32 %s22, %s29
    %s64 = sor.u32 %s62, %s63
    %p65 = scmp.eq.s32.totalorder %s64, 0
    %s67 = sadd.s32 %s66, 1
    %s68 = scalar_select %p65, %s66, %s67
    %p71 = pneg %p65
    %p72 = scmp.eq.s32.totalorder %s14, 1
    %p73 = por %p71, %p72
    %p74 = scmp.ne.s32.totalorder %s66, %s69
    %p75 = scmp.eq.s32.totalorder %s14, 0
    %p76 = por %p74, %p75
    %p77 = scmp.ne.s32.totalorder %s66, %s69
    %p78 = scmp.eq.s32.totalorder %s19, 1
    %p79 = por %p77, %p78
    %p80 = scmp.ne.s32.totalorder %s69, %s70
    %p81 = scmp.eq.s32.totalorder %s19, 0
    %p82 = por %p80, %p81
    %p83 = scmp.ne.s32.totalorder %s69, %s70
    %p84 = scmp.eq.s32.totalorder %s20, 1
    %p85 = por %p83, %p84
    %p87 = scmp.ne.s32.totalorder %s70, %s86
    %p88 = scmp.eq.s32.totalorder %s20, 0
    %p89 = por %p87, %p88
    %s91 = sadd.s32 %s90, 1
    %p94 = scmp.eq.s32.totalorder %s14, 1
    %p95 = scmp.ne.s32.totalorder %s90, %s92
    %p96 = scmp.eq.s32.totalorder %s14, 0
    %p97 = por %p95, %p96
    %p98 = scmp.ne.s32.totalorder %s90, %s92
    %p99 = scmp.eq.s32.totalorder %s19, 1
    %p100 = por %p98, %p99
    %p101 = scmp.ne.s32.totalorder %s92, %s93
    %p102 = scmp.eq.s32.totalorder %s19, 0
    %p103 = por %p101, %p102
    %p104 = scmp.ne.s32.totalorder %s92, %s93
    %p105 = scmp.eq.s32.totalorder %s20, 1
    %p106 = por %p104, %p105
    %p108 = scmp.ne.s32.totalorder %s93, %s107
    %p109 = scmp.eq.s32.totalorder %s20, 0
    %p110 = por %p108, %p109
    %s112 = sadd.s32 %s111, 1
    %p115 = scmp.eq.s32.totalorder %s14, 1
    %p116 = scmp.ne.s32.totalorder %s111, %s113
    %p117 = scmp.eq.s32.totalorder %s14, 0
    %p118 = por %p116, %p117
    %p119 = scmp.ne.s32.totalorder %s111, %s113
    %p120 = scmp.eq.s32.totalorder %s19, 1
    %p121 = por %p119, %p120
    %p122 = scmp.ne.s32.totalorder %s113, %s114
    %p123 = scmp.eq.s32.totalorder %s19, 0
    %p124 = por %p122, %p123
    %p125 = scmp.ne.s32.totalorder %s113, %s114
    %p126 = scmp.eq.s32.totalorder %s20, 1
    %p127 = por %p125, %p126
    %p129 = scmp.ne.s32.totalorder %s114, %s128
    %p130 = scmp.eq.s32.totalorder %s20, 0
    %p131 = por %p129, %p130
    %s133 = sadd.s32 %s132, 1
    %p136 = scmp.eq.s32.totalorder %s14, 1
    %p137 = scmp.ne.s32.totalorder %s132, %s134
    %p138 = scmp.eq.s32.totalorder %s14, 0
    %p139 = por %p137, %p138
    %p140 = scmp.ne.s32.totalorder %s132, %s134
    %p141 = scmp.eq.s32.totalorder %s19, 1
    %p142 = por %p140, %p141
    %p143 = scmp.ne.s32.totalorder %s134, %s135
    %p144 = scmp.eq.s32.totalorder %s19, 0
    %p145 = por %p143, %p144
    %p146 = scmp.ne.s32.totalorder %s134, %s135
    %p147 = scmp.eq.s32.totalorder %s20, 1
    %p148 = por %p146, %p147
    %p150 = scmp.ne.s32.totalorder %s135, %s149
    %p151 = scmp.eq.s32.totalorder %s20, 0
    %p152 = por %p150, %p151
    %s153 = ssub.s32 %s21, %s33
    %s154 = ssub.s32 %s22, %s29
    %s155 = sor.u32 %s153, %s154
    %p156 = scmp.eq.s32.totalorder %s155, 0
    %s158 = sadd.s32 %s157, 1
    %s159 = scalar_select %p156, %s157, %s158
    %p162 = pneg %p156
    %p163 = scmp.eq.s32.totalorder %s14, 1
    %p164 = por %p162, %p163
    %p165 = scmp.ne.s32.totalorder %s157, %s160
    %p166 = scmp.eq.s32.totalorder %s14, 0
    %p167 = por %p165, %p166
    %p168 = scmp.ne.s32.totalorder %s157, %s160
    %p169 = scmp.eq.s32.totalorder %s19, 1
    %p170 = por %p168, %p169
    %p171 = scmp.ne.s32.totalorder %s160, %s161
    %p172 = scmp.eq.s32.totalorder %s19, 0
    %p173 = por %p171, %p172
    %p174 = scmp.ne.s32.totalorder %s160, %s161
    %p175 = scmp.eq.s32.totalorder %s20, 1
    %p176 = por %p174, %p175
    %p178 = scmp.ne.s32.totalorder %s161, %s177
    %p179 = scmp.eq.s32.totalorder %s20, 0
    %p180 = por %p178, %p179
    %s181 = ssub.s32 %s21, %s33
    %s182 = ssub.s32 %s22, %s29
    %s183 = sor.u32 %s181, %s182
    %p184 = scmp.eq.s32.totalorder %s183, 0
    %s186 = sadd.s32 %s185, 1
    %s187 = scalar_select %p184, %s185, %s186
    %p190 = pneg %p184
    %p191 = scmp.eq.s32.totalorder %s14, 1
    %p192 = por %p190, %p191
    %p193 = scmp.ne.s32.totalorder %s185, %s188
    %p194 = scmp.eq.s32.totalorder %s14, 0
    %p195 = por %p193, %p194
    %p196 = scmp.ne.s32.totalorder %s185, %s188
    %p197 = scmp.eq.s32.totalorder %s19, 1
    %p198 = por %p196, %p197
    %p199 = scmp.ne.s32.totalorder %s188, %s189
    %p200 = scmp.eq.s32.totalorder %s19, 0
    %p201 = por %p199, %p200
    %p202 = scmp.ne.s32.totalorder %s188, %s189
    %p203 = scmp.eq.s32.totalorder %s20, 1
    %p204 = por %p202, %p203
    %p206 = scmp.ne.s32.totalorder %s189, %s205
    %p207 = scmp.eq.s32.totalorder %s20, 0
    %p208 = por %p206, %p207
    %s209 = ssub.s32 %s21, %s33
    %s210 = ssub.s32 %s22, %s29
    %s211 = sor.u32 %s209, %s210
    %p212 = scmp.eq.s32.totalorder %s211, 0
    %s214 = sadd.s32 %s213, 1
    %s215 = scalar_select %p212, %s213, %s214
    %p218 = pneg %p212
    %p219 = scmp.eq.s32.totalorder %s14, 1
    %p220 = por %p218, %p219
    %p221 = scmp.ne.s32.totalorder %s213, %s216
    %p222 = scmp.eq.s32.totalorder %s14, 0
    %p223 = por %p221, %p222
    %p224 = scmp.ne.s32.totalorder %s213, %s216
    %p225 = scmp.eq.s32.totalorder %s19, 1
    %p226 = por %p224, %p225
    %p227 = scmp.ne.s32.totalorder %s216, %s217
    %p228 = scmp.eq.s32.totalorder %s19, 0
    %p229 = por %p227, %p228
    %p230 = scmp.ne.s32.totalorder %s216, %s217
    %p231 = scmp.eq.s32.totalorder %s20, 1
    %p232 = por %p230, %p231
    %p234 = scmp.ne.s32.totalorder %s217, %s233
    %p235 = scmp.eq.s32.totalorder %s20, 0
    %p236 = por %p234, %p235
    %p237 = scmp.le.s32.totalorder 1, %s14
    %p238 = scmp.lt.s32.totalorder %s14, 3
    %p239 = pnand %p237, %p238
    %p240 = pneg %p239
    // Predicated region
    $region9: #{ahbf_forward.2} parent=5 // pred_check
      _
    $region10: #{ahbf_forward.2} parent=5 // pred_check_branch
      %242 = sbr.rel (%p239) target = $region12
    $region11: #{ahbf_forward.2} parent=5 // pred_region
      %s243 = ssub.s32 %s14, 1
      // Predicated region
      $region13: #{ahbf_forward.2} parent=11 // pred_check
        %p244 = pneg %p103
      $region14: #{ahbf_forward.2} parent=11 // pred_check_branch
        %246 = sbr.rel (%p244) target = $region16
      $region15: #{ahbf_forward.2} parent=11 // pred_region
        _
      $region16: #{ahbf_forward.2} parent=11 // pred_fallthru
        _
      // Predicated region
      $region17: #{ahbf_forward.2} parent=11 // pred_check
        %p247 = pneg %p124
      $region18: #{ahbf_forward.2} parent=11 // pred_check_branch
        %249 = sbr.rel (%p247) target = $region20
      $region19: #{ahbf_forward.2} parent=11 // pred_region
        _
      $region20: #{ahbf_forward.2} parent=11 // pred_fallthru
        _
      // Predicated region
      $region21: #{ahbf_forward.2} parent=11 // pred_check
        %p250 = pneg %p145
      $region22: #{ahbf_forward.2} parent=11 // pred_check_branch
        %252 = sbr.rel (%p250) target = $region24
      $region23: #{ahbf_forward.2} parent=11 // pred_region
        _
      $region24: #{ahbf_forward.2} parent=11 // pred_fallthru
        _
    $region12: #{ahbf_forward.2} parent=5 // pred_fallthru
      _
    %p253 = scmp.lt.s32.totalorder %s14, 2
    // Predicated region
    $region25: #{ahbf_forward.2} parent=5 // pred_check
      %p254 = pneg %p253
    $region26: #{ahbf_forward.2} parent=5 // pred_check_branch
      %256 = sbr.rel (%p254) target = $region28
    $region27: #{ahbf_forward.2} parent=5 // pred_region
      // Predicated region
      $region29: #{ahbf_forward.2} parent=27 // pred_check
        %p257 = pneg %p48
      $region30: #{ahbf_forward.2} parent=27 // pred_check_branch
        %259 = sbr.rel (%p257) target = $region32
      $region31: #{ahbf_forward.2} parent=27 // pred_region
        %p260 = scmp.lt.s32.totalorder %s21, 1
        %s261 = scalar_select %p260, %s21, 1
        %p262 = scmp.lt.s32.totalorder %s22, 0
        %s263 = scalar_select %p262, %s22, 0
        %s264 = sadd.s32 %s263, %s261
        %s265 = smul.addr %s264, 8
        %s266 = scalar_lea.vmem %s0, %s265
      $region32: #{ahbf_forward.2} parent=27 // pred_fallthru
        _
      // Predicated region
      $region33: #{ahbf_forward.2} parent=27 // pred_check
        %p267 = pneg %p76
      $region34: #{ahbf_forward.2} parent=27 // pred_check_branch
        %269 = sbr.rel (%p267) target = $region36
      $region35: #{ahbf_forward.2} parent=27 // pred_region
        %p270 = scmp.lt.s32.totalorder %s21, 1
        %s271 = scalar_select %p270, %s21, 1
        %p272 = scmp.lt.s32.totalorder %s22, 0
        %s273 = scalar_select %p272, %s22, 0
        %s274 = sadd.s32 %s273, %s271
        %s275 = smul.addr %s274, 8
        %s276 = scalar_lea.vmem %s1, %s275
      $region36: #{ahbf_forward.2} parent=27 // pred_fallthru
        _
    $region28: #{ahbf_forward.2} parent=5 // pred_fallthru
      _
    %p277 = scmp.le.s32.totalorder 1, %s14
    %p278 = scmp.lt.s32.totalorder %s14, 3
    %p279 = pnand %p277, %p278
    %p280 = pneg %p279
    // Predicated region
    $region37: #{ahbf_forward.2} parent=5 // pred_check
      _
    $region38: #{ahbf_forward.2} parent=5 // pred_check_branch
      %282 = sbr.rel (%p279) target = $region40
    $region39: #{ahbf_forward.2} parent=5 // pred_region
      %s283 = ssub.s32 %s14, 1
      %p284 = scmp.lt.s32.totalorder %s23, 1
      %s285 = scalar_select %p284, %s23, 1
      %p286 = scmp.lt.s32.totalorder %s24, 0
      %s287 = scalar_select %p286, %s24, 0
      %s288 = sadd.s32 %s287, %s285
      %s289 = smul.addr %s288, 8
      %s290 = scalar_lea.vmem %s0, %s289
      %p291 = pneg %p54
      %p292 = pneg %p51
      %p293 = scmp.lt.s32.totalorder %s23, 1
      %s294 = scalar_select %p293, %s23, 1
      %p295 = scmp.lt.s32.totalorder %s24, 0
      %s296 = scalar_select %p295, %s24, 0
      %s297 = sadd.s32 %s296, %s294
      %s298 = smul.addr %s297, 8
      %s299 = scalar_lea.vmem %s1, %s298
      %p300 = pneg %p82
      %p301 = pneg %p79
      %p302 = pneg %p103
      %p303 = pneg %p100
      %p304 = pneg %p124
      %p305 = pneg %p121
      %p306 = pneg %p145
      %p307 = pneg %p142
      %p308 = pneg %p173
      %p309 = pneg %p170
      %p310 = scmp.lt.s32.totalorder %s23, 1
      %s311 = scalar_select %p310, %s23, 1
      %p312 = scmp.lt.s32.totalorder %s24, 0
      %s313 = scalar_select %p312, %s24, 0
      %s314 = sadd.s32 %s313, %s311
      %s315 = smul.addr %s314, 4
      %s316 = scalar_lea.vmem %s5, %s315
      %p317 = pneg %p201
      %p318 = pneg %p198
      %p319 = scmp.lt.s32.totalorder %s23, 1
      %s320 = scalar_select %p319, %s23, 1
      %p321 = scmp.lt.s32.totalorder %s24, 0
      %s322 = scalar_select %p321, %s24, 0
      %s323 = sadd.s32 %s322, %s320
      %s324 = smul.addr %s323, 8
      %s325 = scalar_lea.vmem %s6, %s324
      %p326 = pneg %p229
      %p327 = pneg %p226
      %p328 = scmp.lt.s32.totalorder %s23, 1
      %s329 = scalar_select %p328, %s23, 1
      %p330 = scmp.lt.s32.totalorder %s24, 0
      %s331 = scalar_select %p330, %s24, 0
      %s332 = sadd.s32 %s331, %s329
      %s333 = smul.addr %s332, 8
      %s334 = scalar_lea.vmem %s7, %s333
      %p335 = scmp.lt.s32.totalorder %s23, 1
      %s336 = scalar_select %p335, %s23, 1
      %p337 = scmp.lt.s32.totalorder %s24, 0
      %s338 = scalar_select %p337, %s24, 0
      %s339 = sadd.s32 %s338, %s336
      %s340 = smul.addr %s339, 8
      %s341 = scalar_lea.vmem %s0, %s340
      %p342 = scmp.lt.s32.totalorder %s23, 1
      %s343 = scalar_select %p342, %s23, 1
      %p344 = scmp.lt.s32.totalorder %s24, 0
      %s345 = scalar_select %p344, %s24, 0
      %s346 = sadd.s32 %s345, %s343
      %s347 = smul.addr %s346, 8
      %s348 = scalar_lea.vmem %s1, %s347
      %p349 = scmp.lt.s32.totalorder %s23, 1
      %s350 = scalar_select %p349, %s23, 1
      %p351 = scmp.lt.s32.totalorder %s24, 0
      %s352 = scalar_select %p351, %s24, 0
      %s353 = sadd.s32 %s352, %s350
      %s354 = smul.addr %s353, 4
      %s355 = scalar_lea.vmem %s5, %s354
      %p356 = scmp.lt.s32.totalorder %s23, 1
      %s357 = scalar_select %p356, %s23, 1
      %p358 = scmp.lt.s32.totalorder %s24, 0
      %s359 = scalar_select %p358, %s24, 0
      %s360 = sadd.s32 %s359, %s357
      %s361 = smul.addr %s360, 8
      %s362 = scalar_lea.vmem %s6, %s361
      %p363 = scmp.lt.s32.totalorder %s23, 1
      %s364 = scalar_select %p363, %s23, 1
      %p365 = scmp.lt.s32.totalorder %s24, 0
      %s366 = scalar_select %p365, %s24, 0
      %s367 = sadd.s32 %s366, %s364
      %s368 = smul.addr %s367, 8
      %s369 = scalar_lea.vmem %s7, %s368
      %v370 = vld [vmem:[%s2] sm:$0xff]
      %v371 = vld [vmem:[%s341] sm:$0xff]
      %v372 = vld [vmem:[%s3] sm:$0xff]
      %v373 = vld [vmem:[%s348] sm:$0xff]
      %vm374 = vcmask 64512
      %v376 = vsel %vm374, %v372, 0
      %378 = vmatpush.msra.mxu0 0.0
      %379 = vmatpush.msra.mxu0 0.0
      %380 = vmatpush.msra.mxu0 0.0
      %381 = vmatpush.msra.mxu0 0.0
      %382 = vmatpush.msra.mxu0 0.0
      %383 = vmatpush.msra.mxu0 0.0
      %384 = vmatpush.msra.mxu0 0.0
      %385 = vmatpush.msra.mxu0 0.0
      %386 = vmatpush.msra.mxu0 0.0
      %387 = vmatpush.msra.mxu0 0.0
      %388 = vmatpush.msra.mxu0 0.0
      %389 = vmatpush.msra.mxu0 0.0
      %390 = vmatpush.msra.mxu0 0.0
      %391 = vmatpush.msra.mxu0 0.0
      %392 = vmatpush.msra.mxu0 0.0
      %393 = vmatpush.msra.mxu0 %v373
      %394 = vmatmul.f32.gmra.mxu0 %v376
      %v395 = vpop.f32.mrf.mxu0
      %v396 = vadd.f32 0.0, %v395
      %397 = vdwg.mxu0
      %v399 = vsel %vm374, %v370, 0
      %401 = vmatpush.msra.mxu0 0.0
      %402 = vmatpush.msra.mxu0 0.0
      %403 = vmatpush.msra.mxu0 0.0
      %404 = vmatpush.msra.mxu0 0.0
      %405 = vmatpush.msra.mxu0 0.0
      %406 = vmatpush.msra.mxu0 0.0
      %407 = vmatpush.msra.mxu0 0.0
      %408 = vmatpush.msra.mxu0 0.0
      %409 = vmatpush.msra.mxu0 0.0
      %410 = vmatpush.msra.mxu0 0.0
      %411 = vmatpush.msra.mxu0 0.0
      %412 = vmatpush.msra.mxu0 0.0
      %413 = vmatpush.msra.mxu0 0.0
      %414 = vmatpush.msra.mxu0 0.0
      %415 = vmatpush.msra.mxu0 0.0
      %416 = vmatpush.msra.mxu0 %v371
      %417 = vmatmul.f32.gmra.mxu0 %v399
      %v418 = vpop.f32.mrf.mxu0
      %v419 = vadd.f32 %v396, %v418
      %420 = vdwg.mxu0
      %v421 = vld [vmem:[%s4] sm:$0xff]
      %423 = vset.pattern.permute.xlu0 0
      %424 = vperm.xlu0 %423, %v421
      %v425 = vpop.permute.xlu0 %424
      %v427 = vadd.f32 %v419, %v425
      %v428 = vpack.c.bf16 %v427, %v427
      %vm429 = vcmask 519168
      %430 = vst.msk [vmem:[%s355] sm:$0xf] %vm429, %v428
      %vm431 = vcmask 523264
      %v432 = vsel %vm431, %v419, 0.0
      %433 = vadd.xlane.f32.xlu0 %v432
      %v434 = vpop.xlane.xlu0 %433
      %vm435 = vcmask 7168
      %436 = vst.msk [vmem:[%s362] sm:$0xff] %vm435, %v434
      %v437 = vmul.f32 %v419, %v419
      %v438 = vsel %vm431, %v437, 0.0
      %439 = vadd.xlane.f32.xlu0 %v438
      %v440 = vpop.xlane.xlu0 %439
      %441 = vst.msk [vmem:[%s369] sm:$0xff] %vm435, %v440
      %p442 = scmp.lt.s32.totalorder %s23, 1
      %s443 = scalar_select %p442, %s23, 1
      %p444 = scmp.lt.s32.totalorder %s24, 0
      %s445 = scalar_select %p444, %s24, 0
      %s446 = sadd.s32 %s445, %s443
      %s447 = smul.addr %s446, 4
      %s448 = scalar_lea.vmem %s5, %s447
      %p449 = scmp.lt.s32.totalorder %s23, 1
      %s450 = scalar_select %p449, %s23, 1
      %p451 = scmp.lt.s32.totalorder %s24, 0
      %s452 = scalar_select %p451, %s24, 0
      %s453 = sadd.s32 %s452, %s450
      %s454 = smul.addr %s453, 8
      %s455 = scalar_lea.vmem %s6, %s454
      %p456 = scmp.lt.s32.totalorder %s23, 1
      %s457 = scalar_select %p456, %s23, 1
      %p458 = scmp.lt.s32.totalorder %s24, 0
      %s459 = scalar_select %p458, %s24, 0
      %s460 = sadd.s32 %s459, %s457
      %s461 = smul.addr %s460, 8
      %s462 = scalar_lea.vmem %s7, %s461
      // Predicated region
      $region41: #{ahbf_forward.2} parent=39 // pred_check
        %p463 = pneg %p170
      $region42: #{ahbf_forward.2} parent=39 // pred_check_branch
        %465 = sbr.rel (%p463) target = $region44
      $region43: #{ahbf_forward.2} parent=39 // pred_region
        _
      $region44: #{ahbf_forward.2} parent=39 // pred_fallthru
        _
      // Predicated region
      $region45: #{ahbf_forward.2} parent=39 // pred_check
        %p466 = pneg %p198
      $region46: #{ahbf_forward.2} parent=39 // pred_check_branch
        %468 = sbr.rel (%p466) target = $region48
      $region47: #{ahbf_forward.2} parent=39 // pred_region
        _
      $region48: #{ahbf_forward.2} parent=39 // pred_fallthru
        _
      // Predicated region
      $region49: #{ahbf_forward.2} parent=39 // pred_check
        %p469 = pneg %p226
      $region50: #{ahbf_forward.2} parent=39 // pred_check_branch
        %471 = sbr.rel (%p469) target = $region52
      $region51: #{ahbf_forward.2} parent=39 // pred_region
        _
      $region52: #{ahbf_forward.2} parent=39 // pred_fallthru
        _
    $region40: #{ahbf_forward.2} parent=5 // pred_fallthru
      _
    %p472 = scmp.le.s32.totalorder 2, %s14
    // Predicated region
    $region53: #{ahbf_forward.2} parent=5 // pred_check
      %p473 = pneg %p472
    $region54: #{ahbf_forward.2} parent=5 // pred_check_branch
      %475 = sbr.rel (%p473) target = $region56
    $region55: #{ahbf_forward.2} parent=5 // pred_region
      %s476 = ssub.s32 %s14, 2
      // Predicated region
      $region57: #{ahbf_forward.2} parent=55 // pred_check
        %p477 = pneg %p176
      $region58: #{ahbf_forward.2} parent=55 // pred_check_branch
        %479 = sbr.rel (%p477) target = $region60
      $region59: #{ahbf_forward.2} parent=55 // pred_region
        %p480 = scmp.lt.s32.totalorder %s25, 1
        %s481 = scalar_select %p480, %s25, 1
        %p482 = scmp.lt.s32.totalorder %s26, 0
        %s483 = scalar_select %p482, %s26, 0
        %s484 = sadd.s32 %s483, %s481
        %s485 = smul.addr %s484, 4
        %s486 = scalar_lea.vmem %s5, %s485
      $region60: #{ahbf_forward.2} parent=55 // pred_fallthru
        _
      // Predicated region
      $region61: #{ahbf_forward.2} parent=55 // pred_check
        %p487 = pneg %p204
      $region62: #{ahbf_forward.2} parent=55 // pred_check_branch
        %489 = sbr.rel (%p487) target = $region64
      $region63: #{ahbf_forward.2} parent=55 // pred_region
        %p490 = scmp.lt.s32.totalorder %s25, 1
        %s491 = scalar_select %p490, %s25, 1
        %p492 = scmp.lt.s32.totalorder %s26, 0
        %s493 = scalar_select %p492, %s26, 0
        %s494 = sadd.s32 %s493, %s491
        %s495 = smul.addr %s494, 8
        %s496 = scalar_lea.vmem %s6, %s495
      $region64: #{ahbf_forward.2} parent=55 // pred_fallthru
        _
      // Predicated region
      $region65: #{ahbf_forward.2} parent=55 // pred_check
        %p497 = pneg %p232
      $region66: #{ahbf_forward.2} parent=55 // pred_check_branch
        %499 = sbr.rel (%p497) target = $region68
      $region67: #{ahbf_forward.2} parent=55 // pred_region
        %p500 = scmp.lt.s32.totalorder %s25, 1
        %s501 = scalar_select %p500, %s25, 1
        %p502 = scmp.lt.s32.totalorder %s26, 0
        %s503 = scalar_select %p502, %s26, 0
        %s504 = sadd.s32 %s503, %s501
        %s505 = smul.addr %s504, 8
        %s506 = scalar_lea.vmem %s7, %s505
      $region68: #{ahbf_forward.2} parent=55 // pred_fallthru
        _
    $region56: #{ahbf_forward.2} parent=5 // pred_fallthru
      _
  $region6: #{ahbf_forward.2} parent=0 // loop_footer
    %s18 = sadd.s32 1, %s14
  $region7: #{ahbf_forward.2} parent=0 // loop_footer_branch
    %13 = sbr.rel target = $region3
  $region8: #{ahbf_forward.2} parent=0 // loop_exit
    _

</llo_original>
